<compile_context>
chip_gen: v5e
topology: v5e:2x2
jax: 0.10.0
libtpu: 0.0.40
codegen_flags: <defaults>
</compile_context>

<pallas_src>
import math

import jax
import jax.numpy as jnp
from jax import lax
from jax.experimental import pallas as pl
from jax.experimental.pallas import tpu as pltpu


# ---------------------------------------------------------------------------
# Shared fused LSTM step (both directions, one gate matmul, c0 = h0-carry = 0
# for the cell state so c = i*g and the forget gate is dropped at pack time).
# ---------------------------------------------------------------------------
def _fused_step(ids_b1, hidden, w_all, w_h2o, b_h2o, act_scr, *, B, H, nsym):
    K = 2 * H + nsym
    # Activation layout: lanes [0, 2H) = carried hidden, lanes [2H, K) = one-hot
    # token row (selects the pre-projected embedding row; LSTM biases folded in).
    col = lax.broadcasted_iota(jnp.int32, (B, K), 1)
    act_scr[...] = (col == ids_b1 + 2 * H).astype(jnp.float32)   # one-hot @ tail
    act_scr[:, 0:2 * H] = hidden                                 # hidden @ head

    # Single MXU launch for all gates of both directions.
    gates = jnp.dot(act_scr[...], w_all,
                    preferred_element_type=jnp.float32)          # (B, 6H)

    # Gate columns: [i_f, i_r, o_f, o_r, g_f, g_r]
    sig = jax.nn.sigmoid(gates[:, 0:4 * H])                      # i and o only
    g = jnp.tanh(gates[:, 4 * H:6 * H])                          # g only
    c = sig[:, 0:2 * H] * g                                      # c = i * g  (c0 == 0)
    h_both = sig[:, 2 * H:4 * H] * jnp.tanh(c)                   # (B, 2H) = [h_fwd | h_rev]

    # h2o + log-softmax
    logits = jnp.dot(h_both, w_h2o, preferred_element_type=jnp.float32) + b_h2o
    m = jnp.max(logits, axis=-1, keepdims=True)
    z = logits - m
    logp = z - jnp.log(jnp.sum(jnp.exp(z), axis=-1, keepdims=True))
    return logp, h_both


def _store_hidden_view(h_both, dst_ref, B, H):
    # Reproduce PyTorch's `hidden[0].view(B, -1)`: reinterpret the contiguous
    # (2, B, H) h_n buffer as (B, 2H).  View row b is rows (2b, 2b+1) of the
    # direction-major (2B, H) buffer, concatenated along lanes.  B must be even
    # so each view row stays inside a single direction block.
    for b in range(B // 2):
        dst_ref[b:b + 1, 0:H]       = h_both[2 * b:2 * b + 1, 0:H]
        dst_ref[b:b + 1, H:2 * H]   = h_both[2 * b + 1:2 * b + 2, 0:H]
        hb = b + B // 2
        dst_ref[hb:hb + 1, 0:H]     = h_both[2 * b:2 * b + 1, H:2 * H]
        dst_ref[hb:hb + 1, H:2 * H] = h_both[2 * b + 1:2 * b + 2, H:2 * H]


# ---------------------------------------------------------------------------
# Kernels
# ---------------------------------------------------------------------------
def rnn_step_kernel(ids_ref, hidden_ref, w_all_ref, w_h2o_ref, b_h2o_ref,
                    logp_ref, h_ref, act_scr):
    B, twoH = hidden_ref.shape
    H = twoH // 2
    nsym = w_h2o_ref.shape[1]
    logp, h_both = _fused_step(ids_ref[...], hidden_ref[...], w_all_ref[...],
                               w_h2o_ref[...], b_h2o_ref[...], act_scr,
                               B=B, H=H, nsym=nsym)
    logp_ref[...] = logp
    _store_hidden_view(h_both, h_ref, B, H)


def rnn_seq_kernel(ids_ref, hidden0_ref, w_all_ref, w_h2o_ref, b_h2o_ref,
                   logp_ref, h_ref, act_scr, hid_scr):
    T = ids_ref.shape[0]
    B, twoH = hidden0_ref.shape
    H = twoH // 2
    nsym = w_h2o_ref.shape[1]

    hid_scr[...] = hidden0_ref[...]          # hidden carry stays in VMEM

    def body(t, carry):
        logp, h_both = _fused_step(ids_ref[t], hid_scr[...], w_all_ref[...],
                                   w_h2o_ref[...], b_h2o_ref[...], act_scr,
                                   B=B, H=H, nsym=nsym)
        logp_ref[t] = logp
        _store_hidden_view(h_both, hid_scr, B, H)   # PyTorch feedback semantics
        return carry

    lax.fori_loop(0, T, body, 0, unroll=True)
    h_ref[...] = hid_scr[...]


# ---------------------------------------------------------------------------
# One-time weight packing (hoisted out of the forward path)
# ---------------------------------------------------------------------------
def pack_params(params, hidden_size):
    H = hidden_size

    def igo_cols(wT):                       # (3H,4H) -> (i, g, o) column blocks
        return wT[:, 0:H], wT[:, 2 * H:3 * H], wT[:, 3 * H:4 * H]

    i_f, g_f, o_f = igo_cols(params["w_ih_fwd"].T)
    i_r, g_r, o_r = igo_cols(params["w_ih_rev"].T)
    # Gate column order [i_f, i_r, o_f, o_r, g_f, g_r]:
    #   sigmoid -> lanes [0, 4H),  tanh -> lanes [4H, 6H)
    w_fused = jnp.concatenate([i_f, i_r, o_f, o_r, g_f, g_r], axis=1)   # (3H, 6H)

    def igo_bias(b):                        # (4H,) -> (i, g, o)
        return b[0:H], b[2 * H:3 * H], b[3 * H:4 * H]

    bf = params["b_ih_fwd"] + params["b_hh_fwd"]
    br = params["b_ih_rev"] + params["b_hh_rev"]
    bi_f, bg_f, bo_f = igo_bias(bf)
    bi_r, bg_r, bo_r = igo_bias(br)
    bias = jnp.concatenate([bi_f, bi_r, bo_f, bo_r, bg_f, bg_r])        # (6H,)

    w_x = w_fused[0:H, :]                   # rows fed by the embedding
    w_h = w_fused[H:3 * H, :]               # rows fed by the carried hidden

    # Embedding pre-projected through w_x, LSTM biases folded in, then stacked
    # under w_h so the whole gate computation is ONE (B, 2H+nsym) @ (2H+nsym, 6H).
    embed_proj = params["embed_w"] @ w_x + bias[None, :]                # (nsym, 6H)
    w_all = jnp.concatenate([w_h, embed_proj], axis=0)                  # (2H+nsym, 6H)

    return {
        "w_all": w_all,
        "w_h2o": params["h2o_w"].T,                                     # (2H, nsym)
        "b_h2o": params["h2o_b"][None, :],                              # (1, nsym)
    }


def _cost(B, H, nsym, T):
    K = 2 * H + nsym
    flops = T * (2 * B * K * 6 * H + 2 * B * 2 * H * nsym)
    trans = T * (B * (4 * H + 2 * H + 2 * H) + B * nsym)
    bytes_accessed = 4 * (T * B + B * 2 * H + K * 6 * H + 2 * H * nsym + nsym
                          + T * B * nsym + B * 2 * H)
    return pl.CostEstimate(flops=flops, transcendentals=trans,
                           bytes_accessed=bytes_accessed)


# ---------------------------------------------------------------------------
# Forward wrappers
# ---------------------------------------------------------------------------
def rnn_forward(packed, input_x, hidden):
    """Exactly the module's forward: one step, returns (logp, hidden_view)."""
    B, twoH = hidden.shape
    H = twoH // 2
    assert B % 2 == 0
    nsym = packed["w_h2o"].shape[1]
    K = twoH + nsym
    ids2d = input_x.astype(jnp.int32).reshape(B, 1)

    logp, h_view = pl.pallas_call(
        rnn_step_kernel,
        out_shape=(jax.ShapeDtypeStruct((B, nsym), jnp.float32),
                   jax.ShapeDtypeStruct((B, twoH), jnp.float32)),
        scratch_shapes=[pltpu.VMEM((B, K), jnp.float32)],
        cost_estimate=_cost(B, H, nsym, 1),
    )(ids2d, hidden, packed["w_all"], packed["w_h2o"], packed["b_h2o"])
    return logp, h_view


def rnn_forward_seq(packed, input_seq, hidden0):
    """T recurrent applications of the module's forward fused into ONE kernel."""
    T, B = input_seq.shape
    twoH = hidden0.shape[1]
    H = twoH // 2
    assert B % 2 == 0
    nsym = packed["w_h2o"].shape[1]
    K = twoH + nsym
    ids3d = input_seq.astype(jnp.int32).reshape(T, B, 1)

    logp_seq, h_final = pl.pallas_call(
        rnn_seq_kernel,
        out_shape=(jax.ShapeDtypeStruct((T, B, nsym), jnp.float32),
                   jax.ShapeDtypeStruct((B, twoH), jnp.float32)),
        scratch_shapes=[pltpu.VMEM((B, K), jnp.float32),
                        pltpu.VMEM((B, twoH), jnp.float32)],
        cost_estimate=_cost(B, H, nsym, T),
    )(ids3d, hidden0, packed["w_all"], packed["w_h2o"], packed["b_h2o"])
    return logp_seq, h_final


# ---------------------------------------------------------------------------
# Deterministic parameter init (mirrors RNN.__init__ / init_weights shapes)
# ---------------------------------------------------------------------------
def init_params(key, nsymbols, hidden_size):
    H = hidden_size
    stdv = 1.0 / math.sqrt(H)  # PyTorch LSTM default init range
    ks = jax.random.split(key, 9)
    u = lambda k, shape, a: jax.random.uniform(k, shape, jnp.float32, -a, a)
    return {
        "embed_w": u(ks[0], (nsymbols, H), 0.1),          # embed_size == hidden_size
        # bidirectional LSTM, input_size = 3H
        "w_ih_fwd": u(ks[1], (4 * H, 3 * H), stdv),
        "b_ih_fwd": u(ks[2], (4 * H,), stdv),
        "b_hh_fwd": u(ks[3], (4 * H,), stdv),
        "w_ih_rev": u(ks[4], (4 * H, 3 * H), stdv),
        "b_ih_rev": u(ks[5], (4 * H,), stdv),
        "b_hh_rev": u(ks[6], (4 * H,), stdv),
        # h2o: Linear(2H -> nsymbols), bias filled with 0
        "h2o_w": u(ks[7], (nsymbols, 2 * H), 0.1),
        "h2o_b": jnp.zeros((nsymbols,), jnp.float32),
        # NOTE: self.i2h and the LSTM W_hh are never used in forward (h0 = 0).
    }


# ---------------------------------------------------------------------------
# Pure-JAX reference faithful to the PyTorch module (correctness check only)
# ---------------------------------------------------------------------------
def rnn_forward_ref(params, input_x, hidden, *, hidden_size):
    H = hidden_size
    B = hidden.shape[0]
    x = params["embed_w"][input_x]
    combined = jnp.concatenate([x, hidden], axis=1)

    def direction(w_ih, b_ih, b_hh):
        gates = combined @ w_ih.T + b_ih + b_hh           # h0 = 0 => no W_hh term
        i = jax.nn.sigmoid(gates[:, 0:H])
        g = jnp.tanh(gates[:, 2 * H:3 * H])
        o = jax.nn.sigmoid(gates[:, 3 * H:4 * H])
        return o * jnp.tanh(i * g)                        # c0 = 0 => c = i*g

    h_fwd = direction(params["w_ih_fwd"], params["b_ih_fwd"], params["b_hh_fwd"])
    h_rev = direction(params["w_ih_rev"], params["b_ih_rev"], params["b_hh_rev"])
    out = jnp.concatenate([h_fwd, h_rev], axis=1)
    logits = out @ params["h2o_w"].T + params["h2o_b"]
    logp = jax.nn.log_softmax(logits, axis=-1)
    hidden_out = jnp.stack([h_fwd, h_rev]).reshape(B, 2 * H)
    return logp, hidden_out


if __name__ == "__main__":
    NSYMBOLS = 16
    HIDDEN = 32       # embed_size must equal hidden_size for the concat to be 3H
    BATCH = 8
    SEQ = 8

    key = jax.random.PRNGKey(0)
    kp, kx, kh, ks = jax.random.split(key, 4)
    params = init_params(kp, NSYMBOLS, HIDDEN)
    packed = pack_params(params, HIDDEN)                  # one-time packing

    input_x = jax.random.randint(kx, (BATCH,), 0, NSYMBOLS)                  # token ids
    hidden = jax.random.uniform(kh, (BATCH, 2 * HIDDEN), jnp.float32, -0.1, 0.1)
    input_seq = jax.random.randint(ks, (SEQ, BATCH), 0, NSYMBOLS)

    # ---- single step (the module's exact forward) --------------------------
    step_fn = jax.jit(rnn_forward)
    logp, hidden_out = step_fn(packed, input_x, hidden)
    jax.block_until_ready((logp, hidden_out))

    logp_ref, hidden_ref_out = rnn_forward_ref(params, input_x, hidden,
                                               hidden_size=HIDDEN)
    assert logp.shape == (BATCH, NSYMBOLS) and hidden_out.shape == (BATCH, 2 * HIDDEN)
    assert jnp.allclose(logp, logp_ref, atol=1e-5, rtol=1e-5)
    assert jnp.allclose(hidden_out, hidden_ref_out, atol=1e-5, rtol=1e-5)

    # ---- fused sequence: SEQ recurrent steps in ONE pallas_call -------------
    seq_fn = jax.jit(rnn_forward_seq)
    logp_seq, hidden_seq_out = seq_fn(packed, input_seq, hidden)
    jax.block_until_ready((logp_seq, hidden_seq_out))

    hs = hidden
    logps_ref = []
    for t in range(SEQ):
        lp, hs = rnn_forward_ref(params, input_seq[t], hs, hidden_size=HIDDEN)
        logps_ref.append(lp)
    logp_seq_ref = jnp.stack(logps_ref)
    assert logp_seq.shape == (SEQ, BATCH, NSYMBOLS)
    assert hidden_seq_out.shape == (BATCH, 2 * HIDDEN)
    assert jnp.allclose(logp_seq, logp_seq_ref, atol=1e-4, rtol=1e-4)
    assert jnp.allclose(hidden_seq_out, hs, atol=1e-4, rtol=1e-4)

    print("KERNEL_OK")
</pallas_src>

<mosaic_0001>
module attributes {stable_mosaic.version = 11 : i64} {
  func.func @rnn_step_kernel(%arg0: memref<8x1xi32, #tpu.memory_space<vmem>>, %arg1: memref<8x64xf32, #tpu.memory_space<vmem>>, %arg2: memref<80x192xf32, #tpu.memory_space<vmem>>, %arg3: memref<64x16xf32, #tpu.memory_space<vmem>>, %arg4: memref<1x16xf32, #tpu.memory_space<vmem>>, %arg5: memref<8x16xf32, #tpu.memory_space<vmem>>, %arg6: memref<8x64xf32, #tpu.memory_space<vmem>>, %arg7: memref<8x80xf32, #tpu.memory_space<vmem>>) attributes {dimension_semantics = [], scalar_prefetch = 0 : i64, scratch_operands = 1 : i64, tpu.core_type = #tpu.core_type<tc>} {
    %c0 = arith.constant 0 : index
    %c0_0 = arith.constant 0 : index
    %0 = vector.load %arg0[%c0, %c0_0] : memref<8x1xi32, #tpu.memory_space<vmem>>, vector<8x1xi32>
    %c0_1 = arith.constant 0 : index
    %c0_2 = arith.constant 0 : index
    %1 = vector.load %arg1[%c0_1, %c0_2] : memref<8x64xf32, #tpu.memory_space<vmem>>, vector<8x64xf32>
    %c0_3 = arith.constant 0 : index
    %c0_4 = arith.constant 0 : index
    %2 = vector.load %arg2[%c0_3, %c0_4] : memref<80x192xf32, #tpu.memory_space<vmem>>, vector<80x192xf32>
    %c0_5 = arith.constant 0 : index
    %c0_6 = arith.constant 0 : index
    %3 = vector.load %arg3[%c0_5, %c0_6] : memref<64x16xf32, #tpu.memory_space<vmem>>, vector<64x16xf32>
    %c0_7 = arith.constant 0 : index
    %c0_8 = arith.constant 0 : index
    %4 = vector.load %arg4[%c0_7, %c0_8] : memref<1x16xf32, #tpu.memory_space<vmem>>, vector<1x16xf32>
    %5 = tpu.iota {dimensions = array<i32: 1>} : vector<8x80xi32>
    %c64_i32 = arith.constant 64 : i32
    %6 = vector.broadcast %c64_i32 : i32 to vector<8x1xi32>
    %7 = arith.addi %0, %6 : vector<8x1xi32>
    %8 = vector.broadcast %7 : vector<8x1xi32> to vector<8x80xi32>
    %9 = arith.cmpi eq, %5, %8 : vector<8x80xi32>
    %10 = arith.extui %9 : vector<8x80xi1> to vector<8x80xi32>
    %11 = arith.sitofp %10 : vector<8x80xi32> to vector<8x80xf32>
    %c0_9 = arith.constant 0 : index
    %c0_10 = arith.constant 0 : index
    %12 = vector.load %arg7[%c0_9, %c0_10] : memref<8x80xf32, #tpu.memory_space<vmem>>, vector<8x80xf32>
    tpu.vector_store %arg7[%c0_9, %c0_10], %11 {strides = array<i32>} : memref<8x80xf32, #tpu.memory_space<vmem>>, vector<8x80xf32>,
    %c0_11 = arith.constant 0 : index
    %c0_12 = arith.constant 0 : index
    %13 = vector.load %arg7[%c0_11, %c0_12] : memref<8x80xf32, #tpu.memory_space<vmem>>, vector<8x64xf32>
    tpu.vector_store %arg7[%c0_11, %c0_12], %1 {strides = array<i32>} : memref<8x80xf32, #tpu.memory_space<vmem>>, vector<8x64xf32>,
    %c0_13 = arith.constant 0 : index
    %c0_14 = arith.constant 0 : index
    %14 = vector.load %arg7[%c0_13, %c0_14] : memref<8x80xf32, #tpu.memory_space<vmem>>, vector<8x80xf32>
    %cst = arith.constant dense<0.000000e+00> : vector<8x192xf32>
    %15 = tpu.matmul %14, %2, %cst {dimension_numbers = #tpu.dot_dimension_numbers<[1], [0], [0], [1], [0, 0, 1, 1], [], []>} : vector<8x80xf32>, vector<80x192xf32>, vector<8x192xf32> -> vector<8x192xf32>
    %16 = vector.extract_strided_slice %15 {offsets = [0, 0], sizes = [8, 128], strides = [1, 1]} : vector<8x192xf32> to vector<8x128xf32>
    %17 = arith.negf %16 : vector<8x128xf32>
    %18 = math.exp %17 : vector<8x128xf32>
    %cst_15 = arith.constant 1.000000e+00 : f32
    %19 = vector.broadcast %cst_15 : f32 to vector<8x128xf32>
    %20 = arith.addf %19, %18 : vector<8x128xf32>
    %21 = arith.divf %19, %20 : vector<8x128xf32>
    %22 = vector.extract_strided_slice %15 {offsets = [0, 128], sizes = [8, 64], strides = [1, 1]} : vector<8x192xf32> to vector<8x64xf32>
    %23 = math.tanh %22 : vector<8x64xf32>
    %24 = vector.extract_strided_slice %21 {offsets = [0, 0], sizes = [8, 64], strides = [1, 1]} : vector<8x128xf32> to vector<8x64xf32>
    %25 = arith.mulf %24, %23 : vector<8x64xf32>
    %26 = vector.extract_strided_slice %21 {offsets = [0, 64], sizes = [8, 64], strides = [1, 1]} : vector<8x128xf32> to vector<8x64xf32>
    %27 = math.tanh %25 : vector<8x64xf32>
    %28 = arith.mulf %26, %27 : vector<8x64xf32>
    %cst_16 = arith.constant dense<0.000000e+00> : vector<8x16xf32>
    %29 = tpu.matmul %28, %3, %cst_16 {dimension_numbers = #tpu.dot_dimension_numbers<[1], [0], [0], [1], [0, 0, 1, 1], [], []>} : vector<8x64xf32>, vector<64x16xf32>, vector<8x16xf32> -> vector<8x16xf32>
    %30 = vector.broadcast %4 : vector<1x16xf32> to vector<8x16xf32>
    %31 = arith.addf %29, %30 : vector<8x16xf32>
    %cst_17 = arith.constant dense<0xFF800000> : vector<8xf32>
    %32 = vector.multi_reduction <maximumf>, %31, %cst_17 [1] : vector<8x16xf32> to vector<8xf32>
    %33 = vector.shape_cast %32 : vector<8xf32> to vector<8x1xf32>
    %34 = vector.broadcast %33 : vector<8x1xf32> to vector<8x16xf32>
    %35 = arith.subf %31, %34 : vector<8x16xf32>
    %36 = math.exp %35 : vector<8x16xf32>
    %cst_18 = arith.constant dense<0.000000e+00> : vector<8xf32>
    %37 = vector.multi_reduction <add>, %36, %cst_18 [1] : vector<8x16xf32> to vector<8xf32>
    %38 = vector.shape_cast %37 : vector<8xf32> to vector<8x1xf32>
    %39 = math.log %38 : vector<8x1xf32>
    %40 = vector.broadcast %39 : vector<8x1xf32> to vector<8x16xf32>
    %41 = arith.subf %35, %40 : vector<8x16xf32>
    %c0_19 = arith.constant 0 : index
    %c0_20 = arith.constant 0 : index
    %42 = vector.load %arg5[%c0_19, %c0_20] : memref<8x16xf32, #tpu.memory_space<vmem>>, vector<8x16xf32>
    tpu.vector_store %arg5[%c0_19, %c0_20], %41 {strides = array<i32>} : memref<8x16xf32, #tpu.memory_space<vmem>>, vector<8x16xf32>,
    %43 = vector.extract_strided_slice %28 {offsets = [0, 0], sizes = [1, 32], strides = [1, 1]} : vector<8x64xf32> to vector<1x32xf32>
    %c0_21 = arith.constant 0 : index
    %c0_22 = arith.constant 0 : index
    %44 = vector.load %arg6[%c0_21, %c0_22] : memref<8x64xf32, #tpu.memory_space<vmem>>, vector<1x32xf32>
    tpu.vector_store %arg6[%c0_21, %c0_22], %43 {strides = array<i32>} : memref<8x64xf32, #tpu.memory_space<vmem>>, vector<1x32xf32>,
    %45 = vector.extract_strided_slice %28 {offsets = [1, 0], sizes = [1, 32], strides = [1, 1]} : vector<8x64xf32> to vector<1x32xf32>
    %c0_23 = arith.constant 0 : index
    %c32 = arith.constant 32 : index
    %46 = vector.load %arg6[%c0_23, %c32] : memref<8x64xf32, #tpu.memory_space<vmem>>, vector<1x32xf32>
    tpu.vector_store %arg6[%c0_23, %c32], %45 {strides = array<i32>} : memref<8x64xf32, #tpu.memory_space<vmem>>, vector<1x32xf32>,
    %47 = vector.extract_strided_slice %28 {offsets = [0, 32], sizes = [1, 32], strides = [1, 1]} : vector<8x64xf32> to vector<1x32xf32>
    %c4 = arith.constant 4 : index
    %c0_24 = arith.constant 0 : index
    %48 = vector.load %arg6[%c4, %c0_24] : memref<8x64xf32, #tpu.memory_space<vmem>>, vector<1x32xf32>
    tpu.vector_store %arg6[%c4, %c0_24], %47 {strides = array<i32>} : memref<8x64xf32, #tpu.memory_space<vmem>>, vector<1x32xf32>,
    %49 = vector.extract_strided_slice %28 {offsets = [1, 32], sizes = [1, 32], strides = [1, 1]} : vector<8x64xf32> to vector<1x32xf32>
    %c4_25 = arith.constant 4 : index
    %c32_26 = arith.constant 32 : index
    %50 = vector.load %arg6[%c4_25, %c32_26] : memref<8x64xf32, #tpu.memory_space<vmem>>, vector<1x32xf32>
    tpu.vector_store %arg6[%c4_25, %c32_26], %49 {strides = array<i32>} : memref<8x64xf32, #tpu.memory_space<vmem>>, vector<1x32xf32>,
    %51 = vector.extract_strided_slice %28 {offsets = [2, 0], sizes = [1, 32], strides = [1, 1]} : vector<8x64xf32> to vector<1x32xf32>
    %c1 = arith.constant 1 : index
    %c0_27 = arith.constant 0 : index
    %52 = vector.load %arg6[%c1, %c0_27] : memref<8x64xf32, #tpu.memory_space<vmem>>, vector<1x32xf32>
    tpu.vector_store %arg6[%c1, %c0_27], %51 {strides = array<i32>} : memref<8x64xf32, #tpu.memory_space<vmem>>, vector<1x32xf32>,
    %53 = vector.extract_strided_slice %28 {offsets = [3, 0], sizes = [1, 32], strides = [1, 1]} : vector<8x64xf32> to vector<1x32xf32>
    %c1_28 = arith.constant 1 : index
    %c32_29 = arith.constant 32 : index
    %54 = vector.load %arg6[%c1_28, %c32_29] : memref<8x64xf32, #tpu.memory_space<vmem>>, vector<1x32xf32>
    tpu.vector_store %arg6[%c1_28, %c32_29], %53 {strides = array<i32>} : memref<8x64xf32, #tpu.memory_space<vmem>>, vector<1x32xf32>,
    %55 = vector.extract_strided_slice %28 {offsets = [2, 32], sizes = [1, 32], strides = [1, 1]} : vector<8x64xf32> to vector<1x32xf32>
    %c5 = arith.constant 5 : index
    %c0_30 = arith.constant 0 : index
    %56 = vector.load %arg6[%c5, %c0_30] : memref<8x64xf32, #tpu.memory_space<vmem>>, vector<1x32xf32>
    tpu.vector_store %arg6[%c5, %c0_30], %55 {strides = array<i32>} : memref<8x64xf32, #tpu.memory_space<vmem>>, vector<1x32xf32>,
    %57 = vector.extract_strided_slice %28 {offsets = [3, 32], sizes = [1, 32], strides = [1, 1]} : vector<8x64xf32> to vector<1x32xf32>
    %c5_31 = arith.constant 5 : index
    %c32_32 = arith.constant 32 : index
    %58 = vector.load %arg6[%c5_31, %c32_32] : memref<8x64xf32, #tpu.memory_space<vmem>>, vector<1x32xf32>
    tpu.vector_store %arg6[%c5_31, %c32_32], %57 {strides = array<i32>} : memref<8x64xf32, #tpu.memory_space<vmem>>, vector<1x32xf32>,
    %59 = vector.extract_strided_slice %28 {offsets = [4, 0], sizes = [1, 32], strides = [1, 1]} : vector<8x64xf32> to vector<1x32xf32>
    %c2 = arith.constant 2 : index
    %c0_33 = arith.constant 0 : index
    %60 = vector.load %arg6[%c2, %c0_33] : memref<8x64xf32, #tpu.memory_space<vmem>>, vector<1x32xf32>
    tpu.vector_store %arg6[%c2, %c0_33], %59 {strides = array<i32>} : memref<8x64xf32, #tpu.memory_space<vmem>>, vector<1x32xf32>,
    %61 = vector.extract_strided_slice %28 {offsets = [5, 0], sizes = [1, 32], strides = [1, 1]} : vector<8x64xf32> to vector<1x32xf32>
    %c2_34 = arith.constant 2 : index
    %c32_35 = arith.constant 32 : index
    %62 = vector.load %arg6[%c2_34, %c32_35] : memref<8x64xf32, #tpu.memory_space<vmem>>, vector<1x32xf32>
    tpu.vector_store %arg6[%c2_34, %c32_35], %61 {strides = array<i32>} : memref<8x64xf32, #tpu.memory_space<vmem>>, vector<1x32xf32>,
    %63 = vector.extract_strided_slice %28 {offsets = [4, 32], sizes = [1, 32], strides = [1, 1]} : vector<8x64xf32> to vector<1x32xf32>
    %c6 = arith.constant 6 : index
    %c0_36 = arith.constant 0 : index
    %64 = vector.load %arg6[%c6, %c0_36] : memref<8x64xf32, #tpu.memory_space<vmem>>, vector<1x32xf32>
    tpu.vector_store %arg6[%c6, %c0_36], %63 {strides = array<i32>} : memref<8x64xf32, #tpu.memory_space<vmem>>, vector<1x32xf32>,
    %65 = vector.extract_strided_slice %28 {offsets = [5, 32], sizes = [1, 32], strides = [1, 1]} : vector<8x64xf32> to vector<1x32xf32>
    %c6_37 = arith.constant 6 : index
    %c32_38 = arith.constant 32 : index
    %66 = vector.load %arg6[%c6_37, %c32_38] : memref<8x64xf32, #tpu.memory_space<vmem>>, vector<1x32xf32>
    tpu.vector_store %arg6[%c6_37, %c32_38], %65 {strides = array<i32>} : memref<8x64xf32, #tpu.memory_space<vmem>>, vector<1x32xf32>,
    %67 = vector.extract_strided_slice %28 {offsets = [6, 0], sizes = [1, 32], strides = [1, 1]} : vector<8x64xf32> to vector<1x32xf32>
    %c3 = arith.constant 3 : index
    %c0_39 = arith.constant 0 : index
    %68 = vector.load %arg6[%c3, %c0_39] : memref<8x64xf32, #tpu.memory_space<vmem>>, vector<1x32xf32>
    tpu.vector_store %arg6[%c3, %c0_39], %67 {strides = array<i32>} : memref<8x64xf32, #tpu.memory_space<vmem>>, vector<1x32xf32>,
    %69 = vector.extract_strided_slice %28 {offsets = [7, 0], sizes = [1, 32], strides = [1, 1]} : vector<8x64xf32> to vector<1x32xf32>
    %c3_40 = arith.constant 3 : index
    %c32_41 = arith.constant 32 : index
    %70 = vector.load %arg6[%c3_40, %c32_41] : memref<8x64xf32, #tpu.memory_space<vmem>>, vector<1x32xf32>
    tpu.vector_store %arg6[%c3_40, %c32_41], %69 {strides = array<i32>} : memref<8x64xf32, #tpu.memory_space<vmem>>, vector<1x32xf32>,
    %71 = vector.extract_strided_slice %28 {offsets = [6, 32], sizes = [1, 32], strides = [1, 1]} : vector<8x64xf32> to vector<1x32xf32>
    %c7 = arith.constant 7 : index
    %c0_42 = arith.constant 0 : index
    %72 = vector.load %arg6[%c7, %c0_42] : memref<8x64xf32, #tpu.memory_space<vmem>>, vector<1x32xf32>
    tpu.vector_store %arg6[%c7, %c0_42], %71 {strides = array<i32>} : memref<8x64xf32, #tpu.memory_space<vmem>>, vector<1x32xf32>,
    %73 = vector.extract_strided_slice %28 {offsets = [7, 32], sizes = [1, 32], strides = [1, 1]} : vector<8x64xf32> to vector<1x32xf32>
    %c7_43 = arith.constant 7 : index
    %c32_44 = arith.constant 32 : index
    %74 = vector.load %arg6[%c7_43, %c32_44] : memref<8x64xf32, #tpu.memory_space<vmem>>, vector<1x32xf32>
    tpu.vector_store %arg6[%c7_43, %c32_44], %73 {strides = array<i32>} : memref<8x64xf32, #tpu.memory_space<vmem>>, vector<1x32xf32>,
    return
  }
}

</mosaic_0001>

<llo_original>
// kernel: rnn_forward.1
$region0: #{rnn_forward.1}
  #allocation0 [shape = 'u32[]', space=smem, size = 0x4, offset = 0x4, fixed_abs, tag = 'smem constant byte address 0x4 - core index']
  #allocation1 [shape = 'u32[72,128]{1,0:T(1,128)}', space=vmem, size = 0x9000, scoped, tag = 'internal scratch']
  #allocation2 [shape = 'f32[8,80]{1,0:T(8,128)}', space=vmem, size = 0x1000, scoped, tag = 'scratch operand']
  %s0 = inlined_call_operand.vmem [shape: s32[8,1], index: 0, kind: input, shape index: {}]
  %s1 = inlined_call_operand.vmem [shape: f32[8,64], index: 1, kind: input, shape index: {}]
  %s2 = inlined_call_operand.hbm [shape: f32[80,192], index: 2, kind: input, shape index: {}]
  %s3 = inlined_call_operand.vmem [shape: f32[64,16], index: 3, kind: input, shape index: {}]
  %s4 = inlined_call_operand.vmem [shape: f32[1,16], index: 4, kind: input, shape index: {}]
  %s5 = inlined_call_operand.hbm [shape: f32[8,16], index: 5, kind: output, shape index: {0}]
  %s6 = inlined_call_operand.hbm [shape: f32[8,64], index: 6, kind: output, shape index: {1}]
  %7 = xla_tuple %s5, %s6
  %s8 = sld [smem:[#allocation0]]
  $region42: #{rnn_forward.1} parent=0
    _
  %s10 = ssub.s32 1, %s8
  %s11 = scalar_select 0, %s10, %s8
  $region1: #{rnn_forward.1} parent=0
    #allocation3 [shape = 'u8[81920]{0}', space=vmem, size = 0x14000, scoped, tag = 'input window, operand 2, single buffered']
    #allocation4 [shape = 's32[1]{0}', space=sflag, size = 0x4, scoped, tag = 'scoped memory for rnn_forward.1']
    #allocation5 [shape = 's32[1]{0}', space=sflag, size = 0x4, scoped, tag = 'scoped memory for rnn_forward.1']
    #allocation6 [shape = 'u8[4096]{0}', space=vmem, size = 0x1000, scoped, tag = 'output window, operand 0, single buffered']
    #allocation7 [shape = 'u8[4096]{0}', space=vmem, size = 0x1000, scoped, tag = 'output window, operand 1, single buffered']
    #allocation8 [shape = 's32[1]{0}', space=sflag, size = 0x4, scoped, tag = 'scoped memory for rnn_forward.1']
    %12 = vsyncpa [#allocation4], 0
    %13 = vsyncpa [#allocation5], 0
    %14 = vsyncpa [#allocation8], 0
    // Predicated region
    $region2: #{rnn_forward.1} parent=1 // pred_check
      _
    $region3: #{rnn_forward.1} parent=1 // pred_check_branch
      %16 = sbr.rel (0) target = $region5
    $region4: #{rnn_forward.1} parent=1 // pred_region
      _
    $region5: #{rnn_forward.1} parent=1 // pred_fallthru
      _
    // Predicated region
    $region6: #{rnn_forward.1} parent=1 // pred_check
      _
    $region7: #{rnn_forward.1} parent=1 // pred_check_branch
      %18 = sbr.rel (0) target = $region9
    $region8: #{rnn_forward.1} parent=1 // pred_region
      _
    $region9: #{rnn_forward.1} parent=1 // pred_fallthru
      _
    // Predicated region
    $region10: #{rnn_forward.1} parent=1 // pred_check
      _
    $region11: #{rnn_forward.1} parent=1 // pred_check_branch
      %20 = sbr.rel (0) target = $region13
    $region12: #{rnn_forward.1} parent=1 // pred_region
      %22 = vsyncadd [#allocation4], 0
      %s23 = sshll.u32 %s2, 4
      %s24 = int_to_ptr.hbm [resolvable:$true] %s23
      %s25 = sshll.u32 [#allocation3], 4
      %s26 = int_to_ptr.vmem [resolvable:$true] %s25
      %31 = dma.hbm_to_vmem [thread:$0]  %s24, 2560, %s26, [#allocation4], 256, 256, 16
    $region13: #{rnn_forward.1} parent=1 // pred_fallthru
      _
    // Predicated region
    $region14: #{rnn_forward.1} parent=1 // pred_check
      _
    $region15: #{rnn_forward.1} parent=1 // pred_check_branch
      %33 = sbr.rel (0) target = $region17
    $region16: #{rnn_forward.1} parent=1 // pred_region
      _
    $region17: #{rnn_forward.1} parent=1 // pred_fallthru
      _
    // Predicated region
    $region18: #{rnn_forward.1} parent=1 // pred_check
      _
    $region19: #{rnn_forward.1} parent=1 // pred_check_branch
      %35 = sbr.rel (0) target = $region21
    $region20: #{rnn_forward.1} parent=1 // pred_region
      _
    $region21: #{rnn_forward.1} parent=1 // pred_fallthru
      _
    // Predicated region
    $region22: #{rnn_forward.1} parent=1 // pred_check
      _
    $region23: #{rnn_forward.1} parent=1 // pred_check_branch
      %37 = sbr.rel (0) target = $region25
    $region24: #{rnn_forward.1} parent=1 // pred_region
      %39 = dma.done [#allocation4], 2560
    $region25: #{rnn_forward.1} parent=1 // pred_fallthru
      _
    %v40 = vld [vmem:[%s0] sm:$0xff]
    %v41 = vld [vmem:[%s1] sm:$0xff]
    %v42 = vld [vmem:[#allocation3] sm:$0xff]
    %v43 = vld [vmem:[#allocation3 + $0x8] sm:$0xff]
    %v44 = vld [vmem:[#allocation3 + $0x10] sm:$0xff]
    %v45 = vld [vmem:[#allocation3 + $0x18] sm:$0xff]
    %v46 = vld [vmem:[#allocation3 + $0x20] sm:$0xff]
    %v47 = vld [vmem:[#allocation3 + $0x28] sm:$0xff]
    %v48 = vld [vmem:[#allocation3 + $0x30] sm:$0xff]
    %v49 = vld [vmem:[#allocation3 + $0x38] sm:$0xff]
    %v50 = vld [vmem:[#allocation3 + $0x40] sm:$0xff]
    %v51 = vld [vmem:[#allocation3 + $0x48] sm:$0xff]
    %v52 = vld [vmem:[#allocation3 + $0x50] sm:$0xff]
    %v53 = vld [vmem:[#allocation3 + $0x58] sm:$0xff]
    %v54 = vld [vmem:[#allocation3 + $0x60] sm:$0xff]
    %v55 = vld [vmem:[#allocation3 + $0x68] sm:$0xff]
    %v56 = vld [vmem:[#allocation3 + $0x70] sm:$0xff]
    %v57 = vld [vmem:[#allocation3 + $0x78] sm:$0xff]
    %v58 = vld [vmem:[#allocation3 + $0x80] sm:$0xff]
    %v59 = vld [vmem:[#allocation3 + $0x88] sm:$0xff]
    %v60 = vld [vmem:[#allocation3 + $0x90] sm:$0xff]
    %v61 = vld [vmem:[#allocation3 + $0x98] sm:$0xff]
    %v62 = vld [vmem:[%s3] sm:$0xff]
    %v63 = vld [vmem:[%s3 + $0x8] sm:$0xff]
    %v64 = vld [vmem:[%s3 + $0x10] sm:$0xff]
    %v65 = vld [vmem:[%s3 + $0x18] sm:$0xff]
    %v66 = vld [vmem:[%s3 + $0x20] sm:$0xff]
    %v67 = vld [vmem:[%s3 + $0x28] sm:$0xff]
    %v68 = vld [vmem:[%s3 + $0x30] sm:$0xff]
    %v69 = vld [vmem:[%s3 + $0x38] sm:$0xff]
    %v70 = vld [vmem:[%s4] sm:$0x1]
    %v71 = vlaneseq
    %v72 = vand.u32 %v71, 127
    %v73 = vadd.s32 %v40, 64
    %74 = vset.pattern.permute.xlu0 0
    %75 = vperm.xlu0 %74, %v73
    %v76 = vpop.permute.xlu0 %75
    %vm77 = vcmp.eq.s32.totalorder %v72, %v76
    %v78 = vsel %vm77, 1, 0
    %v79 = vcvt.s32.f32 %v78
    %vm80 = vcmask 654336
    %81 = vst.msk [vmem:[#allocation2] sm:$0xff] %vm80, %v79
    %vm82 = vcmask 523264
    %83 = vst.msk [vmem:[#allocation2] sm:$0xff] %vm82, %v41
    %v84 = vld [vmem:[#allocation2] sm:$0xff]
    %v86 = vsel %vm80, %v84, 0
    %88 = vmatpush.msra.mxu0 0.0
    %89 = vmatpush.msra.mxu0 0.0
    %90 = vmatpush.msra.mxu0 0.0
    %91 = vmatpush.msra.mxu0 0.0
    %92 = vmatpush.msra.mxu0 0.0
    %93 = vmatpush.msra.mxu0 0.0
    %94 = vmatpush.msra.mxu0 %v60
    %95 = vmatpush.msra.mxu0 %v58
    %96 = vmatpush.msra.mxu0 %v56
    %97 = vmatpush.msra.mxu0 %v54
    %98 = vmatpush.msra.mxu0 %v52
    %99 = vmatpush.msra.mxu0 %v50
    %100 = vmatpush.msra.mxu0 %v48
    %101 = vmatpush.msra.mxu0 %v46
    %102 = vmatpush.msra.mxu0 %v44
    %103 = vmatpush.msra.mxu0 %v42
    %104 = vmatmul.f32.gmra.mxu0 %v86
    %v105 = vpop.f32.mrf.mxu0
    %v106 = vadd.f32 0.0, %v105
    %107 = vdwg.mxu0
    %108 = vmatpush.msra.mxu0 0.0
    %109 = vmatpush.msra.mxu0 0.0
    %110 = vmatpush.msra.mxu0 0.0
    %111 = vmatpush.msra.mxu0 0.0
    %112 = vmatpush.msra.mxu0 0.0
    %113 = vmatpush.msra.mxu0 0.0
    %114 = vmatpush.msra.mxu0 %v61
    %115 = vmatpush.msra.mxu0 %v59
    %116 = vmatpush.msra.mxu0 %v57
    %117 = vmatpush.msra.mxu0 %v55
    %118 = vmatpush.msra.mxu0 %v53
    %119 = vmatpush.msra.mxu0 %v51
    %120 = vmatpush.msra.mxu0 %v49
    %121 = vmatpush.msra.mxu0 %v47
    %122 = vmatpush.msra.mxu0 %v45
    %123 = vmatpush.msra.mxu0 %v43
    %124 = vmatmul.f32.gmra.mxu0 %v86
    %v125 = vpop.f32.mrf.mxu0
    %v126 = vadd.f32 0.0, %v125
    %127 = vdwg.mxu0
    %v128 = vxor.u32 %v106, 2147483648
    %v129 = vmul.f32 %v128, 1.442695
    %v130 = vpow.pop %v129
    %v131 = vadd.f32 %v130, 1.0
    %v132 = vrcp.pop %v131
    %v133 = vmul.f32 %v131, %v132
    %v134 = vsub.f32 1.0, %v133
    %v135 = vmul.f32 %v132, %v134
    %v136 = vadd.f32 %v132, %v135
    %vm137 = vweird.f32 %v131
    %vm138 = vweird.f32 %v132
    %vm139 = vmor %vm137, %vm138
    %v140 = vsel %vm139, %v132, %v136
    %v141 = vand.u32 2147483647, %v131
    %vm142 = vcmp.eq.f32.partialorder %v141, 8.507059e+37
    %v143 = vand.u32 %v131, 2147483648
    %v144 = vor.u32 1.1754944e-38, %v143
    %v145 = vsel %vm142, %v144, %v140
    %v146 = vmul.f32 1.0, %v145
    %v147 = vtanh.pop %v126
    %v148 = vmul.f32 %v146, %v147
    %v149 = vtanh.pop %v148
    %151 = vrot.lane.b32.xlu0 %v149, 64
    %v152 = vpop.permute.xlu0 %151
    %v154 = vmul.f32 %v146, %v152
    %v156 = vperm.slane %v70, 0
    %159 = vrot.lane.b32.xlu0 %v154, 64
    %v160 = vpop.permute.xlu0 %159
    %v161 = vsel %vm82, %v160, 0
    %163 = vmatpush.msra.mxu0 0.0
    %164 = vmatpush.msra.mxu0 0.0
    %165 = vmatpush.msra.mxu0 0.0
    %166 = vmatpush.msra.mxu0 0.0
    %167 = vmatpush.msra.mxu0 0.0
    %168 = vmatpush.msra.mxu0 0.0
    %169 = vmatpush.msra.mxu0 0.0
    %170 = vmatpush.msra.mxu0 0.0
    %171 = vmatpush.msra.mxu0 %v69
    %172 = vmatpush.msra.mxu0 %v68
    %173 = vmatpush.msra.mxu0 %v67
    %174 = vmatpush.msra.mxu0 %v66
    %175 = vmatpush.msra.mxu0 %v65
    %176 = vmatpush.msra.mxu0 %v64
    %177 = vmatpush.msra.mxu0 %v63
    %178 = vmatpush.msra.mxu0 %v62
    %179 = vmatmul.f32.gmra.mxu0 %v161
    %v180 = vpop.f32.mrf.mxu0
    %v181 = vadd.f32 %v156, %v180
    %182 = vdwg.mxu0
    %vm183 = vcmask 130048
    %v184 = vsel %vm183, %v181, -inf
    %185 = vmax.xlane.f32.xlu0 %v184
    %v186 = vpop.xlane.xlu0 %185
    %v187 = vsub.f32 %v181, %v186
    %v188 = vmul.f32 %v187, 1.442695
    %v189 = vpow.pop %v188
    %v190 = vsel %vm183, %v189, 0.0
    %191 = vadd.xlane.f32.xlu0 %v190
    %v192 = vpop.xlane.xlu0 %191
    %v193 = vlog2.pop %v192
    %v194 = vmul.f32 %v193, 0.6931472
    %v195 = vsub.f32 %v187, %v194
    %196 = vst.msk [vmem:[#allocation6] sm:$0xff] %vm183, %v195
    %vm198 = vcmask 253952
    %199 = vst.msk [vmem:[#allocation7] sm:$0x1] %vm198, %v160
    %200 = vrot.lane.b32.xlu0 %v154, 96
    %v201 = vpop.permute.xlu0 %200
    %vm203 = vcmask 517377
    %204 = vst.msk [vmem:[#allocation7 - $0x1] sm:$0x2] %vm203, %v201
    %205 = vrot.lane.b32.xlu0 %v154, 32
    %v206 = vpop.permute.xlu0 %205
    %208 = vst.msk [vmem:[#allocation7 + $0x4] sm:$0x1] %vm198, %v206
    %209 = vst.msk [vmem:[#allocation7 + $0x3] sm:$0x2] %vm203, %v160
    %vm210 = vcmask 256002
    %211 = vst.msk [vmem:[#allocation7 - $0x1] sm:$0x4] %vm210, %v160
    %vm212 = vcmask 519427
    %213 = vst.msk [vmem:[#allocation7 - $0x2] sm:$0x8] %vm212, %v201
    %214 = vst.msk [vmem:[#allocation7 + $0x3] sm:$0x4] %vm210, %v206
    %215 = vst.msk [vmem:[#allocation7 + $0x2] sm:$0x8] %vm212, %v160
    %vm216 = vcmask 258052
    %217 = vst.msk [vmem:[#allocation7 - $0x2] sm:$0x10] %vm216, %v160
    %vm218 = vcmask 521477
    %219 = vst.msk [vmem:[#allocation7 - $0x3] sm:$0x20] %vm218, %v201
    %220 = vst.msk [vmem:[#allocation7 + $0x2] sm:$0x10] %vm216, %v206
    %221 = vst.msk [vmem:[#allocation7 + $0x1] sm:$0x20] %vm218, %v160
    %vm222 = vcmask 260102
    %223 = vst.msk [vmem:[#allocation7 - $0x3] sm:$0x40] %vm222, %v160
    %vm224 = vcmask 523527
    %225 = vst.msk [vmem:[#allocation7 - $0x4] sm:$0x80] %vm224, %v201
    %226 = vst.msk [vmem:[#allocation7 + $0x1] sm:$0x40] %vm222, %v206
    %227 = vst.msk [vmem:[#allocation7] sm:$0x80] %vm224, %v160
    // Predicated region
    $region26: #{rnn_forward.1} parent=1 // pred_check
      _
    $region27: #{rnn_forward.1} parent=1 // pred_check_branch
      %229 = sbr.rel (0) target = $region29
    $region28: #{rnn_forward.1} parent=1 // pred_region
      %231 = vsyncadd [#allocation5], 0
      %s233 = sshll.u32 [#allocation6], 4
      %s234 = int_to_ptr.vmem [resolvable:$true] %s233
      %s235 = sshll.u32 %s5, 4
      %s236 = int_to_ptr.hbm [resolvable:$true] %s235
      %238 = dma.vmem_to_hbm [thread:$0]  %s234, 128, %s236, [#allocation5]
    $region29: #{rnn_forward.1} parent=1 // pred_fallthru
      _
    // Predicated region
    $region30: #{rnn_forward.1} parent=1 // pred_check
      _
    $region31: #{rnn_forward.1} parent=1 // pred_check_branch
      %240 = sbr.rel (0) target = $region33
    $region32: #{rnn_forward.1} parent=1 // pred_region
      %242 = vsyncadd [#allocation8], 0
      %s244 = sshll.u32 [#allocation7], 4
      %s245 = int_to_ptr.vmem [resolvable:$true] %s244
      %s246 = sshll.u32 %s6, 4
      %s247 = int_to_ptr.hbm [resolvable:$true] %s246
      %249 = dma.vmem_to_hbm [thread:$0]  %s245, 128, %s247, [#allocation8]
    $region33: #{rnn_forward.1} parent=1 // pred_fallthru
      _
    // Predicated region
    $region34: #{rnn_forward.1} parent=1 // pred_check
      _
    $region35: #{rnn_forward.1} parent=1 // pred_check_branch
      %251 = sbr.rel (0) target = $region37
    $region36: #{rnn_forward.1} parent=1 // pred_region
      %253 = dma.done [#allocation5], 128
    $region37: #{rnn_forward.1} parent=1 // pred_fallthru
      _
    // Predicated region
    $region38: #{rnn_forward.1} parent=1 // pred_check
      _
    $region39: #{rnn_forward.1} parent=1 // pred_check_branch
      %255 = sbr.rel (0) target = $region41
    $region40: #{rnn_forward.1} parent=1 // pred_region
      %257 = dma.done [#allocation8], 128
    $region41: #{rnn_forward.1} parent=1 // pred_fallthru
      _
    %258 = vsyncpa [#allocation4], 1
    %259 = vsyncpa [#allocation5], 1
    %260 = vsyncpa [#allocation8], 1

</llo_original>
